<compile_context>
chip_gen: v7x
topology: tpu7x:2x2x1
jax: 0.10.0
libtpu: 0.0.40
codegen_flags: <defaults>
</compile_context>

<pallas_src>
import functools

import jax
import jax.numpy as jnp
from jax.experimental import pallas as pl
from jax.experimental.pallas import tpu as pltpu


def _round_up(x, m):
    return ((x + m - 1) // m) * m


def _mdn_fused_kernel(x_ref, w_ref, b_ref, alp_ref, mu_ref, sig_ref, *, G, GP):
    x = x_ref[...]                                                   # (TB, F)

    # Single fused matmul for all three heads (lane-dense, 128-padded N).
    y = jnp.dot(x, w_ref[...], preferred_element_type=jnp.float32) + b_ref[...]

    lane = jax.lax.broadcasted_iota(jnp.int32, y.shape, dimension=1)
    alpha_mask = lane < G                                            # first G lanes

    # Softmax max over the alpha lanes only.
    m = jnp.max(jnp.where(alpha_mask, y, -jnp.inf), axis=-1, keepdims=True)

    # One exp pass over the whole slab:
    #   alpha lanes -> exp(y - m)   (softmax numerator)
    #   other lanes -> exp(y)       (sigma lanes use this directly; rest unused)
    e_all = jnp.exp(y - jnp.where(alpha_mask, m, 0.0))
    denom = jnp.sum(jnp.where(alpha_mask, e_all, 0.0), axis=-1, keepdims=True)

    # Three direct (un-padded) stores; exact divide so alpha rows sum to 1.
    alp_ref[...] = e_all[:, :G] / denom
    mu_ref[...] = y[:, G:G + GP]
    sig_ref[...] = e_all[:, G + GP:G + 2 * GP]


def pack_params(params, num_gaus, dim_prob):
    """Pack the three heads into one (F, N_pad) weight and (1, N_pad) bias.

    Do this ONCE (at init), not per forward call.
    """
    wa, ba, wm, bm, ws, bs = params
    F = wa.shape[0]
    G = num_gaus
    GP = num_gaus * dim_prob
    N = G + 2 * GP
    N_pad = _round_up(N, 128)

    w_packed = jnp.zeros((F, N_pad), jnp.float32)
    w_packed = w_packed.at[:, :G].set(wa)
    w_packed = w_packed.at[:, G:G + GP].set(wm)
    w_packed = w_packed.at[:, G + GP:N].set(ws)

    b_packed = jnp.zeros((1, N_pad), jnp.float32)
    b_packed = b_packed.at[:, :G].set(ba)
    b_packed = b_packed.at[:, G:G + GP].set(bm)
    b_packed = b_packed.at[:, G + GP:N].set(bs)
    return w_packed, b_packed


@functools.partial(jax.jit, static_argnames=("num_gaus", "dim_prob", "tb"))
def classic_mdn_forward(batch, w_packed, b_packed, num_gaus, dim_prob, tb=None):
    """batch: (B, dim_fea) float32.  Returns (alp, mu, sigma) like the torch module."""
    B, F = batch.shape
    G = num_gaus
    GP = num_gaus * dim_prob
    N_pad = w_packed.shape[1]

    # Batch tile: large enough to amortize the ~0.35 us/step overhead, small
    # enough for v7x's 64 MiB VMEM; when B > 8 ensure >= 2 grid steps so the
    # "parallel" axis can shard across both v7x TensorCores.
    if tb is None:
        TB_MAX = 4096
        if B <= 8:
            tb = 8
        else:
            tb = min(TB_MAX, _round_up(pl.cdiv(B, 2), 8))
    grid = (pl.cdiv(B, tb),)

    kernel = functools.partial(_mdn_fused_kernel, G=G, GP=GP)

    alp, mu2d, sig2d = pl.pallas_call(
        kernel,
        out_shape=(
            jax.ShapeDtypeStruct((B, G), jnp.float32),
            jax.ShapeDtypeStruct((B, GP), jnp.float32),
            jax.ShapeDtypeStruct((B, GP), jnp.float32),
        ),
        grid=grid,
        in_specs=[
            pl.BlockSpec((tb, F), lambda i: (i, 0)),       # activations: tiled
            pl.BlockSpec((F, N_pad), lambda i: (0, 0)),    # packed weights: resident
            pl.BlockSpec((1, N_pad), lambda i: (0, 0)),    # packed bias: resident
        ],
        out_specs=(
            pl.BlockSpec((tb, G), lambda i: (i, 0)),
            pl.BlockSpec((tb, GP), lambda i: (i, 0)),
            pl.BlockSpec((tb, GP), lambda i: (i, 0)),
        ),
        compiler_params=pltpu.CompilerParams(
            dimension_semantics=("parallel",),
        ),
    )(batch, w_packed, b_packed)

    # Contiguous row-major reshapes, matching torch .view(-1, num_gaus, dim_prob).
    mu = mu2d.reshape(B, num_gaus, dim_prob)
    sigma = sig2d.reshape(B, num_gaus, dim_prob)
    return alp, mu, sigma


def init_params(key, dim_fea, dim_prob, num_gaus):
    """Deterministic synthetic init (PyTorch-style uniform(-1/sqrt(F), 1/sqrt(F)))."""
    F, G, GP = dim_fea, num_gaus, dim_prob * num_gaus
    bound = 1.0 / jnp.sqrt(jnp.float32(F))
    ks = jax.random.split(key, 6)
    u = lambda k, shape: jax.random.uniform(k, shape, jnp.float32, -bound, bound)
    wa = u(ks[0], (F, G))
    ba = u(ks[1], (1, G))
    wm = u(ks[2], (F, GP))
    bm = u(ks[3], (1, GP))
    ws = u(ks[4], (F, GP))
    bs = u(ks[5], (1, GP))
    return (wa, ba, wm, bm, ws, bs)


if __name__ == "__main__":
    dim_fea, dim_prob, num_gaus = 32, 4, 8
    B = 8

    key = jax.random.PRNGKey(0)
    k_x, k_p = jax.random.split(key)
    x = jax.random.normal(k_x, (B, dim_fea), dtype=jnp.float32)
    params = init_params(k_p, dim_fea, dim_prob, num_gaus)
    w_packed, b_packed = pack_params(params, num_gaus, dim_prob)  # packed once

    alp, mu, sigma = classic_mdn_forward(x, w_packed, b_packed, num_gaus, dim_prob)
    jax.block_until_ready((alp, mu, sigma))

    # reference check in plain JAX
    wa, ba, wm, bm, ws, bs = params
    alp_ref = jax.nn.softmax(x @ wa + ba, axis=1)
    mu_ref = (x @ wm + bm).reshape(B, num_gaus, dim_prob)
    sigma_ref = jnp.exp(x @ ws + bs).reshape(B, num_gaus, dim_prob)
    assert alp.shape == (B, num_gaus)
    assert mu.shape == (B, num_gaus, dim_prob)
    assert sigma.shape == (B, num_gaus, dim_prob)
    assert jnp.allclose(alp, alp_ref, atol=1e-5, rtol=1e-5)
    assert jnp.allclose(mu, mu_ref, atol=1e-5)
    assert jnp.allclose(sigma, sigma_ref, atol=1e-4)

    print("KERNEL_OK")
</pallas_src>

<mosaic_0001>
module attributes {stable_mosaic.version = 11 : i64} {
  func.func @_mdn_fused_kernel(%arg0: i32, %arg1: memref<8x32xf32, #tpu.memory_space<vmem>>, %arg2: memref<32x128xf32, #tpu.memory_space<vmem>>, %arg3: memref<1x128xf32, #tpu.memory_space<vmem>>, %arg4: memref<8x8xf32, #tpu.memory_space<vmem>>, %arg5: memref<8x32xf32, #tpu.memory_space<vmem>>, %arg6: memref<8x32xf32, #tpu.memory_space<vmem>>) attributes {dimension_semantics = [#tpu.dimension_semantics<parallel>], iteration_bounds = array<i64: 1>, scalar_prefetch = 0 : i64, scratch_operands = 0 : i64, tpu.core_type = #tpu.core_type<tc>, window_params = [{transform_indices = @transform_0, window_bounds = array<i64: 8, 32>}, {pipeline_mode = #tpu.pipeline_mode<synchronous>, transform_indices = @transform_1, window_bounds = array<i64: 32, 128>}, {pipeline_mode = #tpu.pipeline_mode<synchronous>, transform_indices = @transform_2, window_bounds = array<i64: 1, 128>}, {transform_indices = @transform_3, window_bounds = array<i64: 8, 8>}, {transform_indices = @transform_4, window_bounds = array<i64: 8, 32>}, {transform_indices = @transform_5, window_bounds = array<i64: 8, 32>}]} {
    %c0 = arith.constant 0 : index
    %c0_0 = arith.constant 0 : index
    %0 = vector.load %arg1[%c0, %c0_0] : memref<8x32xf32, #tpu.memory_space<vmem>>, vector<8x32xf32>
    %c0_1 = arith.constant 0 : index
    %c0_2 = arith.constant 0 : index
    %1 = vector.load %arg2[%c0_1, %c0_2] : memref<32x128xf32, #tpu.memory_space<vmem>>, vector<32x128xf32>
    %cst = arith.constant dense<0.000000e+00> : vector<8x128xf32>
    %2 = tpu.matmul %0, %1, %cst {dimension_numbers = #tpu.dot_dimension_numbers<[1], [0], [0], [1], [0, 0, 1, 1], [], []>} : vector<8x32xf32>, vector<32x128xf32>, vector<8x128xf32> -> vector<8x128xf32>
    %c0_3 = arith.constant 0 : index
    %c0_4 = arith.constant 0 : index
    %3 = vector.load %arg3[%c0_3, %c0_4] : memref<1x128xf32, #tpu.memory_space<vmem>>, vector<1x128xf32>
    %4 = vector.broadcast %3 : vector<1x128xf32> to vector<8x128xf32>
    %5 = arith.addf %2, %4 : vector<8x128xf32>
    %6 = tpu.iota {dimensions = array<i32: 1>} : vector<8x128xi32>
    %c8_i32 = arith.constant 8 : i32
    %7 = vector.broadcast %c8_i32 : i32 to vector<8x128xi32>
    %8 = arith.cmpi slt, %6, %7 : vector<8x128xi32>
    %cst_5 = arith.constant 0xFF800000 : f32
    %9 = vector.broadcast %cst_5 : f32 to vector<8x128xf32>
    %10 = arith.select %8, %5, %9 : vector<8x128xi1>, vector<8x128xf32>
    %cst_6 = arith.constant dense<0xFF800000> : vector<8xf32>
    %11 = vector.multi_reduction <maximumf>, %10, %cst_6 [1] : vector<8x128xf32> to vector<8xf32>
    %12 = vector.shape_cast %11 : vector<8xf32> to vector<8x1xf32>
    %cst_7 = arith.constant 0.000000e+00 : f32
    %13 = vector.shape_cast %12 : vector<8x1xf32> to vector<8x1xf32>
    %14 = vector.broadcast %13 : vector<8x1xf32> to vector<8x128xf32>
    %15 = vector.broadcast %cst_7 : f32 to vector<8x128xf32>
    %16 = arith.select %8, %14, %15 : vector<8x128xi1>, vector<8x128xf32>
    %17 = arith.subf %5, %16 : vector<8x128xf32>
    %18 = math.exp %17 : vector<8x128xf32>
    %cst_8 = arith.constant 0.000000e+00 : f32
    %19 = vector.broadcast %cst_8 : f32 to vector<8x128xf32>
    %20 = arith.select %8, %18, %19 : vector<8x128xi1>, vector<8x128xf32>
    %cst_9 = arith.constant dense<0.000000e+00> : vector<8xf32>
    %21 = vector.multi_reduction <add>, %20, %cst_9 [1] : vector<8x128xf32> to vector<8xf32>
    %22 = vector.shape_cast %21 : vector<8xf32> to vector<8x1xf32>
    %23 = vector.extract_strided_slice %18 {offsets = [0, 0], sizes = [8, 8], strides = [1, 1]} : vector<8x128xf32> to vector<8x8xf32>
    %24 = vector.broadcast %22 : vector<8x1xf32> to vector<8x8xf32>
    %25 = arith.divf %23, %24 : vector<8x8xf32>
    %c0_10 = arith.constant 0 : index
    %c0_11 = arith.constant 0 : index
    %26 = vector.load %arg4[%c0_10, %c0_11] : memref<8x8xf32, #tpu.memory_space<vmem>>, vector<8x8xf32>
    tpu.vector_store %arg4[%c0_10, %c0_11], %25 {strides = array<i32>} : memref<8x8xf32, #tpu.memory_space<vmem>>, vector<8x8xf32>,
    %27 = vector.extract_strided_slice %5 {offsets = [0, 8], sizes = [8, 32], strides = [1, 1]} : vector<8x128xf32> to vector<8x32xf32>
    %c0_12 = arith.constant 0 : index
    %c0_13 = arith.constant 0 : index
    %28 = vector.load %arg5[%c0_12, %c0_13] : memref<8x32xf32, #tpu.memory_space<vmem>>, vector<8x32xf32>
    tpu.vector_store %arg5[%c0_12, %c0_13], %27 {strides = array<i32>} : memref<8x32xf32, #tpu.memory_space<vmem>>, vector<8x32xf32>,
    %29 = vector.extract_strided_slice %18 {offsets = [0, 40], sizes = [8, 32], strides = [1, 1]} : vector<8x128xf32> to vector<8x32xf32>
    %c0_14 = arith.constant 0 : index
    %c0_15 = arith.constant 0 : index
    %30 = vector.load %arg6[%c0_14, %c0_15] : memref<8x32xf32, #tpu.memory_space<vmem>>, vector<8x32xf32>
    tpu.vector_store %arg6[%c0_14, %c0_15], %29 {strides = array<i32>} : memref<8x32xf32, #tpu.memory_space<vmem>>, vector<8x32xf32>,
    return
  }
  func.func @transform_0(%arg0: i32) -> (i32, i32) {
    %c0_i32 = arith.constant 0 : i32
    %c0_i32_0 = arith.constant 0 : i32
    return %arg0, %c0_i32 : i32, i32
  }
  func.func @transform_1(%arg0: i32) -> (i32, i32) {
    %c0_i32 = arith.constant 0 : i32
    %c0_i32_0 = arith.constant 0 : i32
    %c0_i32_1 = arith.constant 0 : i32
    return %c0_i32, %c0_i32_0 : i32, i32
  }
  func.func @transform_2(%arg0: i32) -> (i32, i32) {
    %c0_i32 = arith.constant 0 : i32
    %c0_i32_0 = arith.constant 0 : i32
    %c0_i32_1 = arith.constant 0 : i32
    return %c0_i32, %c0_i32_0 : i32, i32
  }
  func.func @transform_3(%arg0: i32) -> (i32, i32) {
    %c0_i32 = arith.constant 0 : i32
    %c0_i32_0 = arith.constant 0 : i32
    return %arg0, %c0_i32 : i32, i32
  }
  func.func @transform_4(%arg0: i32) -> (i32, i32) {
    %c0_i32 = arith.constant 0 : i32
    %c0_i32_0 = arith.constant 0 : i32
    return %arg0, %c0_i32 : i32, i32
  }
  func.func @transform_5(%arg0: i32) -> (i32, i32) {
    %c0_i32 = arith.constant 0 : i32
    %c0_i32_0 = arith.constant 0 : i32
    return %arg0, %c0_i32 : i32, i32
  }
}

</mosaic_0001>

<llo_original>
// kernel: classic_mdn_forward.1
$region0: #{classic_mdn_forward.1}
  #allocation0 [shape = 'u32[]', space=smem, size = 0x4, offset = 0x4, fixed_abs, tag = 'smem constant byte address 0x4 - core index']
  #allocation1 [shape = 'u32[144,128]{1,0:T(1,128)}', space=vmem, size = 0x12000, scoped, tag = 'internal scratch']
  %s0 = inlined_call_operand.hbm [shape: f32[8,32], index: 0, kind: input, shape index: {}]
  %s1 = inlined_call_operand.hbm [shape: f32[32,128], index: 1, kind: input, shape index: {}]
  %s2 = inlined_call_operand.vmem [shape: f32[1,128], index: 2, kind: input, shape index: {}]
  %s3 = inlined_call_operand.hbm [shape: f32[8,8], index: 3, kind: output, shape index: {0}]
  %s4 = inlined_call_operand.vmem [shape: f32[8,32], index: 4, kind: output, shape index: {1}]
  %s5 = inlined_call_operand.vmem [shape: f32[8,32], index: 5, kind: output, shape index: {2}]
  %6 = xla_tuple %s3, %s4, %s5
  %s7 = sld [smem:[#allocation0]]
  $region46: #{classic_mdn_forward.1} parent=0
    _
  %s9 = ssub.s32 1, %s7
  %s10 = scalar_select 0, %s9, %s7
  $region1: #{classic_mdn_forward.1} parent=0
    #allocation2 [shape = 'u8[4096]{0}', space=vmem, size = 0x1000, scoped, tag = 'input window, operand 0, single buffered']
    #allocation3 [shape = 's32[1]{0}', space=sflag, size = 0x4, scoped, tag = 'scoped memory for classic_mdn_forward.1']
    #allocation4 [shape = 's32[1]{0}', space=sflag, size = 0x4, scoped, tag = 'scoped memory for classic_mdn_forward.1']
    #allocation5 [shape = 'u8[16384]{0}', space=vmem, size = 0x4000, scoped, tag = 'input window, operand 1, single buffered']
    #allocation6 [shape = 's32[1]{0}', space=sflag, size = 0x4, scoped, tag = 'scoped memory for classic_mdn_forward.1']
    #allocation7 [shape = 'u8[4096]{0}', space=vmem, size = 0x1000, scoped, tag = 'output window, operand 0, single buffered']
    %11 = vsyncpa [#allocation3], 0
    %12 = vsyncpa [#allocation6], 0
    %13 = vsyncpa [#allocation4], 0
    // Predicated region
    $region2: #{classic_mdn_forward.1} parent=1 // pred_check
      _
    $region3: #{classic_mdn_forward.1} parent=1 // pred_check_branch
      %15 = sbr.rel (0) target = $region5
    $region4: #{classic_mdn_forward.1} parent=1 // pred_region
      %s17 = ssub.s32 128, 128
      %18 = vsyncadd [#allocation3], %s17
      %s20 = sshll.u32 [#allocation2], 4
      %s21 = int_to_ptr.vmem [resolvable:$true] %s20
      %23 = dma.hbm_to_vmem [thread:$0]  %s0, 128, %s21, [#allocation3]
    $region5: #{classic_mdn_forward.1} parent=1 // pred_fallthru
      _
    // Predicated region
    $region6: #{classic_mdn_forward.1} parent=1 // pred_check
      _
    $region7: #{classic_mdn_forward.1} parent=1 // pred_check_branch
      %25 = sbr.rel (0) target = $region9
    $region8: #{classic_mdn_forward.1} parent=1 // pred_region
      %s27 = ssub.s32 512, 512
      %28 = vsyncadd [#allocation6], %s27
      %s29 = sshll.u32 [#allocation5], 4
      %s30 = int_to_ptr.vmem [resolvable:$true] %s29
      %35 = dma.hbm_to_vmem [thread:$0]  %s1, 512, %s30, [#allocation6], 128, 128, 8
    $region9: #{classic_mdn_forward.1} parent=1 // pred_fallthru
      _
    // Predicated region
    $region10: #{classic_mdn_forward.1} parent=1 // pred_check
      _
    $region11: #{classic_mdn_forward.1} parent=1 // pred_check_branch
      %37 = sbr.rel (0) target = $region13
    $region12: #{classic_mdn_forward.1} parent=1 // pred_region
      _
    $region13: #{classic_mdn_forward.1} parent=1 // pred_fallthru
      _
    // Predicated region
    $region14: #{classic_mdn_forward.1} parent=1 // pred_check
      _
    $region15: #{classic_mdn_forward.1} parent=1 // pred_check_branch
      %39 = sbr.rel (0) target = $region17
    $region16: #{classic_mdn_forward.1} parent=1 // pred_region
      %40 = dma.done [#allocation3], 128
    $region17: #{classic_mdn_forward.1} parent=1 // pred_fallthru
      _
    // Predicated region
    $region18: #{classic_mdn_forward.1} parent=1 // pred_check
      _
    $region19: #{classic_mdn_forward.1} parent=1 // pred_check_branch
      %42 = sbr.rel (0) target = $region21
    $region20: #{classic_mdn_forward.1} parent=1 // pred_region
      %43 = dma.done [#allocation6], 512
    $region21: #{classic_mdn_forward.1} parent=1 // pred_fallthru
      _
    %v44 = vld [vmem:[#allocation2] sm:$0xff]
    %v45 = vld [vmem:[#allocation5] sm:$0xff]
    %v46 = vld [vmem:[#allocation5 + $0x8] sm:$0xff]
    %v47 = vld [vmem:[#allocation5 + $0x10] sm:$0xff]
    %v48 = vld [vmem:[#allocation5 + $0x18] sm:$0xff]
    %v49 = vld [vmem:[%s2] sm:$0x1]
    %v51 = vlaneseq
    %v52 = vshrl.u32 %v51, 7
    %v53 = vsub.s32 0, %v52
    %v54 = vrot.slane %v49, %v53
    %vm56 = vcmask 261120
    %v58 = vsel %vm56, %v44, 0
    %60 = vmatprep.subr.mxu0 0.0
    %61 = vmatpush1.msra.mxu0 %v45
    %62 = vmatprep.subr.mxu0 0.0
    %63 = vmatpush1.msra.mxu0 %v46
    %64 = vmatprep.subr.mxu0 0.0
    %65 = vmatpush1.msra.mxu0 %v47
    %66 = vmatprep.subr.mxu0 0.0
    %67 = vmatpush1.msra.mxu0 %v48
    %68 = vmatprep.subr.mxu0 0.0
    %69 = vmatpush1.msra.mxu0 0.0
    %70 = vmatprep.subr.mxu0 0.0
    %71 = vmatpush1.msra.mxu0 0.0
    %72 = vmatprep.subr.mxu0 0.0
    %73 = vmatpush1.msra.mxu0 0.0
    %74 = vmatprep.subr.mxu0 0.0
    %75 = vmatpush1.msra.mxu0 0.0
    %76 = vmatprep.subr.mxu0 0.0
    %77 = vmatpush1.msra.mxu0 0.0
    %78 = vmatprep.subr.mxu0 0.0
    %79 = vmatpush1.msra.mxu0 0.0
    %80 = vmatprep.subr.mxu0 0.0
    %81 = vmatpush1.msra.mxu0 0.0
    %82 = vmatprep.subr.mxu0 0.0
    %83 = vmatpush1.msra.mxu0 0.0
    %84 = vmatprep.subr.mxu0 0.0
    %85 = vmatpush1.msra.mxu0 0.0
    %86 = vmatprep.subr.mxu0 0.0
    %87 = vmatpush1.msra.mxu0 0.0
    %88 = vmatprep.subr.mxu0 0.0
    %89 = vmatpush1.msra.mxu0 0.0
    %90 = vmatprep.subr.mxu0 0.0
    %91 = vmatpush1.msra.mxu0 0.0
    %92 = vmatprep.subr.mxu0 0.0
    %93 = vmatpush1.msra.mxu0 0.0
    %94 = vmatprep.subr.mxu0 0.0
    %95 = vmatpush1.msra.mxu0 0.0
    %96 = vmatprep.subr.mxu0 0.0
    %97 = vmatpush1.msra.mxu0 0.0
    %98 = vmatprep.subr.mxu0 0.0
    %99 = vmatpush1.msra.mxu0 0.0
    %100 = vmatprep.subr.mxu0 0.0
    %101 = vmatpush1.msra.mxu0 0.0
    %102 = vmatprep.subr.mxu0 0.0
    %103 = vmatpush1.msra.mxu0 0.0
    %104 = vmatprep.subr.mxu0 0.0
    %105 = vmatpush1.msra.mxu0 0.0
    %106 = vmatprep.subr.mxu0 0.0
    %107 = vmatpush1.msra.mxu0 0.0
    %108 = vmatprep.subr.mxu0 0.0
    %109 = vmatpush1.msra.mxu0 0.0
    %110 = vmatprep.subr.mxu0 0.0
    %111 = vmatpush1.msra.mxu0 0.0
    %112 = vmatprep.subr.mxu0 0.0
    %113 = vmatpush1.msra.mxu0 0.0
    %114 = vmatprep.subr.mxu0 0.0
    %115 = vmatpush1.msra.mxu0 0.0
    %116 = vmatprep.subr.mxu0 0.0
    %117 = vmatpush1.msra.mxu0 0.0
    %118 = vmatprep.subr.mxu0 0.0
    %119 = vmatpush1.msra.mxu0 0.0
    %120 = vmatprep.subr.mxu0 0.0
    %121 = vmatpush1.msra.mxu0 0.0
    %122 = vmatprep.subr.mxu0 0.0
    %123 = vmatpush1.msra.mxu0 0.0
    %124 = vmatprep.mubr.f32.mxu0 0.0
    %125 = vmatmul.mubr.f32.gmra.mrb[0].mxu0 %v58
    %v126 = vpop.f32.mrb[0].mxu0
    %v127 = vadd.f32 %v54, %v126
    %v128 = vpop.f32.mrb[0].mxu0
    %129 = vdwg.mxu0
    %v130 = vlaneseq
    %v131 = vand.u32 %v130, 127
    %vm132 = vcmp.lt.s32.totalorder %v131, 8
    %v133 = vsel %vm132, %v127, -inf
    %134 = vmax.xlane.f32.xlu0 %v133
    %v135 = vpop.xlane.xlu0 %134
    %v136 = vsel %vm132, %v135, 0.0
    %v137 = vsub.f32 %v127, %v136
    %v138 = vmul.f32 %v137, 1.442695
    %v139 = vpow.pop %v138
    %v140 = vsel %vm132, %v139, 0.0
    %141 = vadd.xlane.f32.xlu0 %v140
    %v142 = vpop.xlane.xlu0 %141
    %v143 = vrcp.pop %v142
    %v144 = vmul.f32 %v139, %v143
    %vm145 = vcmask 64512
    %146 = vst.msk [vmem:[#allocation7] sm:$0xff] %vm145, %v144
    %148 = vrot.lane.b32.xlu0 %v127, 120
    %v149 = vpop.permute.xlu0 %148
    %151 = vst.msk [vmem:[%s4] sm:$0xff] %vm56, %v149
    %153 = vrot.lane.b32.xlu0 %v139, 88
    %v154 = vpop.permute.xlu0 %153
    %156 = vst.msk [vmem:[%s5] sm:$0xff] %vm56, %v154
    // Predicated region
    $region22: #{classic_mdn_forward.1} parent=1 // pred_check
      _
    $region23: #{classic_mdn_forward.1} parent=1 // pred_check_branch
      %158 = sbr.rel (0) target = $region25
    $region24: #{classic_mdn_forward.1} parent=1 // pred_region
      %s160 = ssub.s32 128, 128
      %161 = vsyncadd [#allocation4], %s160
      %s163 = sshll.u32 [#allocation7], 4
      %s164 = int_to_ptr.vmem [resolvable:$true] %s163
      %166 = dma.vmem_to_hbm [thread:$0]  %s164, 128, %s3, [#allocation4]
    $region25: #{classic_mdn_forward.1} parent=1 // pred_fallthru
      _
    // Predicated region
    $region26: #{classic_mdn_forward.1} parent=1 // pred_check
      _
    $region27: #{classic_mdn_forward.1} parent=1 // pred_check_branch
      %168 = sbr.rel (0) target = $region29
    $region28: #{classic_mdn_forward.1} parent=1 // pred_region
      _
    $region29: #{classic_mdn_forward.1} parent=1 // pred_fallthru
      _
    // Predicated region
    $region30: #{classic_mdn_forward.1} parent=1 // pred_check
      _
    $region31: #{classic_mdn_forward.1} parent=1 // pred_check_branch
      %170 = sbr.rel (0) target = $region33
    $region32: #{classic_mdn_forward.1} parent=1 // pred_region
      _
    $region33: #{classic_mdn_forward.1} parent=1 // pred_fallthru
      _
    // Predicated region
    $region34: #{classic_mdn_forward.1} parent=1 // pred_check
      _
    $region35: #{classic_mdn_forward.1} parent=1 // pred_check_branch
      %172 = sbr.rel (0) target = $region37
    $region36: #{classic_mdn_forward.1} parent=1 // pred_region
      %173 = dma.done [#allocation4], 128
    $region37: #{classic_mdn_forward.1} parent=1 // pred_fallthru
      _
    // Predicated region
    $region38: #{classic_mdn_forward.1} parent=1 // pred_check
      _
    $region39: #{classic_mdn_forward.1} parent=1 // pred_check_branch
      %175 = sbr.rel (0) target = $region41
    $region40: #{classic_mdn_forward.1} parent=1 // pred_region
      _
    $region41: #{classic_mdn_forward.1} parent=1 // pred_fallthru
      _
    // Predicated region
    $region42: #{classic_mdn_forward.1} parent=1 // pred_check
      _
    $region43: #{classic_mdn_forward.1} parent=1 // pred_check_branch
      %177 = sbr.rel (0) target = $region45
    $region44: #{classic_mdn_forward.1} parent=1 // pred_region
      _
    $region45: #{classic_mdn_forward.1} parent=1 // pred_fallthru
      _
    %178 = vsyncpa [#allocation3], 1
    %179 = vsyncpa [#allocation6], 1
    %180 = vsyncpa [#allocation4], 1

</llo_original>
